<compile_context>
chip_gen: v6e
topology: v6e:2x2x1
jax: 0.10.0
libtpu: 0.0.40
codegen_flags: <defaults>
</compile_context>

<pallas_src>
import math

import jax
import jax.numpy as jnp
from jax import lax
from jax.experimental import pallas as pl
from jax.experimental.pallas import tpu as pltpu


def _round_up(n: int, m: int) -> int:
    return ((n + m - 1) // m) * m


def _choose_token_block(n_pad8: int, cap: int) -> int:
    """Largest multiple of 8 that divides n_pad8 and is <= cap (>= 8)."""
    best = 8
    d = 8
    while d <= min(n_pad8, cap):
        if n_pad8 % d == 0:
            best = d
        d += 8
    return best


def _vmem_capacity_bytes(default: int = 64 << 20) -> int:
    """Per-generation VMEM capacity (128 MiB on v5e/v6e, 64 MiB per-TC on v7x)."""
    try:
        info = pltpu.get_tpu_info()
        cap = getattr(info, "vmem_capacity_bytes", None)
        if cap:
            return int(cap)
    except Exception:
        pass
    return default


# --------------------------------------------------------------------------- kernels


def _onehot_kernel(scale: float):
    """Small vocab: gather == one-hot matmul on the MXU (table resident in VMEM)."""

    def kernel(ids_ref, tbl_ref, out_ref):
        tb = out_ref.shape[0]
        vocab = tbl_ref.shape[0]
        ids = ids_ref[...]                                          # (tb, 1) int32
        cols = lax.broadcasted_iota(jnp.int32, (tb, vocab), 1)
        onehot = (cols == ids).astype(tbl_ref.dtype)                # (tb, vocab)
        acc = jnp.dot(onehot, tbl_ref[...],
                      preferred_element_type=jnp.float32,
                      precision=lax.Precision.HIGHEST)              # (tb, d_model) f32
        out_ref[...] = (acc * scale).astype(out_ref.dtype)

    return kernel


def _vmem_gather_kernel(tb: int, scale: float, unroll: int):
    """Mid vocab: table resident in VMEM, per-token row copy, one dense scale pass."""

    def kernel(ids_ref, tbl_ref, out_ref):
        base = pl.program_id(0) * tb

        def body(j, carry):
            idx = ids_ref[base + j]                                 # SMEM scalar
            out_ref[pl.ds(j, 1), :] = tbl_ref[pl.ds(idx, 1), :]     # (1, d_model)
            return carry

        lax.fori_loop(0, tb, body, 0, unroll=unroll)
        # Single dense (tb, d_model) scale pass instead of per-row partial-vreg muls.
        out_ref[...] = out_ref[...] * scale

    return kernel


def _hbm_gather_kernel(tb: int, scale: float, depth: int):
    """Large vocab: DMA each row straight from HBM into its out_ref slice.

    `depth` copies kept in flight on a round-robin semaphore pool; no staging buffer.
    """

    def kernel(ids_ref, emb_hbm, out_ref, sems):
        base = pl.program_id(0) * tb

        def copy(tok, row_id):
            return pltpu.make_async_copy(
                emb_hbm.at[pl.ds(row_id, 1)],          # (1, d_model) HBM row
                out_ref.at[pl.ds(tok, 1), :],          # its destination in the block
                sems.at[tok % depth],
            )

        # Prime `depth` outstanding row DMAs (static slots).
        for j in range(depth):
            copy(j, ids_ref[base + j]).start()

        # Steady state: read BOTH SMEM ids before the .wait() (a DMA wait breaks
        # SMEM sst->sld forwarding), retire the copy issued `depth` iters ago,
        # then issue the next one into the freed semaphore slot.
        def body(j, carry):
            next_id = ids_ref[base + j]
            prev_id = ids_ref[base + j - depth]
            copy(j - depth, prev_id).wait()
            copy(j, next_id).start()
            return carry

        lax.fori_loop(depth, tb, body, 0)

        # Retire the tail (reconstruct the exact descriptors).
        for j in range(tb - depth, tb):
            copy(j, ids_ref[base + j]).wait()

        # One dense vectorized scale pass over the whole block.
        out_ref[...] = out_ref[...] * scale

    return kernel


# --------------------------------------------------------------------------- wrapper


def input_embedding(
    token_ids: jax.Array,
    emb_table: jax.Array,
    *,
    block_tokens: int = 512,
    dma_depth: int = 16,
    onehot_vocab_max: int = 2048,
    path: str = "auto",           # "auto" | "onehot" | "vmem" | "hbm"
) -> jax.Array:
    """token_ids: (B, S) int; emb_table: (vocab, d_model) -> (B, S, d_model)."""
    B, S = token_ids.shape
    vocab_size, d_model = emb_table.shape
    scale = math.sqrt(d_model)
    out_dtype = emb_table.dtype
    itemsize = emb_table.dtype.itemsize

    flat_ids = token_ids.reshape(-1).astype(jnp.int32)
    n_tok = flat_ids.shape[0]

    # Token block: prefer a multiple-of-8 divisor of the 8-padded count (no padding,
    # no post-kernel slice). Fall back to a large block + small pad if the only
    # divisors are tiny (would otherwise explode the number of grid steps).
    block_tokens = max(8, _round_up(block_tokens, 8))
    n_pad8 = _round_up(n_tok, 8)
    tb = _choose_token_block(n_pad8, block_tokens)
    if tb * 4 < min(block_tokens, n_pad8):
        tb = min(block_tokens, n_pad8)
    n_pad = _round_up(n_tok, tb)
    n_blocks = n_pad // tb
    if n_pad != n_tok:
        flat_ids = jnp.pad(flat_ids, (0, n_pad - n_tok))   # padded ids -> row 0

    table_bytes = vocab_size * d_model * itemsize
    out_block_bytes = tb * d_model * itemsize

    cap = _vmem_capacity_bytes()
    budget = (3 * cap) // 4                                  # headroom for scratch/regalloc
    # Constant-index table BlockSpec still gets the default double buffer -> 2x.
    resident_bytes = 2 * table_bytes + 2 * out_block_bytes + (2 << 20)
    resident_ok = resident_bytes <= budget

    if path == "auto":
        if vocab_size <= onehot_vocab_max and resident_ok:
            path = "onehot"
        elif resident_ok:
            path = "vmem"
        else:
            path = "hbm"

    sem = ("parallel",)   # disjoint output block per grid step

    if path == "onehot":
        ids2d = flat_ids.reshape(n_pad, 1)
        out_flat = pl.pallas_call(
            _onehot_kernel(scale),
            out_shape=jax.ShapeDtypeStruct((n_pad, d_model), out_dtype),
            grid_spec=pltpu.PrefetchScalarGridSpec(
                num_scalar_prefetch=0,
                grid=(n_blocks,),
                in_specs=[
                    pl.BlockSpec((tb, 1), lambda i: (i, 0)),
                    pl.BlockSpec((vocab_size, d_model), lambda i: (0, 0)),
                ],
                out_specs=pl.BlockSpec((tb, d_model), lambda i: (i, 0)),
            ),
            compiler_params=pltpu.CompilerParams(
                dimension_semantics=sem,
                vmem_limit_bytes=int(min(cap, max(32 << 20, resident_bytes))),
            ),
        )(ids2d, emb_table)

    elif path == "vmem":
        vregs_per_row = max(1, -(-d_model // 128))
        unroll = max(1, min(8, 32 // vregs_per_row))   # keep live row vregs well < 64
        out_flat = pl.pallas_call(
            _vmem_gather_kernel(tb, scale, unroll),
            out_shape=jax.ShapeDtypeStruct((n_pad, d_model), out_dtype),
            grid_spec=pltpu.PrefetchScalarGridSpec(
                num_scalar_prefetch=1,                       # flat ids live in SMEM
                grid=(n_blocks,),
                in_specs=[
                    # Whole table resident in VMEM; constant block index -> fetched once.
                    pl.BlockSpec((vocab_size, d_model), lambda i, ids: (0, 0)),
                ],
                out_specs=pl.BlockSpec((tb, d_model), lambda i, ids: (i, 0)),
            ),
            compiler_params=pltpu.CompilerParams(
                dimension_semantics=sem,
                vmem_limit_bytes=int(min(cap, max(32 << 20, resident_bytes))),
            ),
        )(flat_ids, emb_table)

    else:  # "hbm"
        depth = max(1, min(dma_depth, tb))
        hbm_bytes = 2 * out_block_bytes + (2 << 20)
        out_flat = pl.pallas_call(
            _hbm_gather_kernel(tb, scale, depth),
            out_shape=jax.ShapeDtypeStruct((n_pad, d_model), out_dtype),
            grid_spec=pltpu.PrefetchScalarGridSpec(
                num_scalar_prefetch=1,
                grid=(n_blocks,),
                in_specs=[pl.BlockSpec(memory_space=pl.ANY)],   # table stays in HBM
                out_specs=pl.BlockSpec((tb, d_model), lambda i, ids: (i, 0)),
                scratch_shapes=[pltpu.SemaphoreType.DMA((depth,))],
            ),
            compiler_params=pltpu.CompilerParams(
                dimension_semantics=sem,
                vmem_limit_bytes=int(min(cap, max(32 << 20, hbm_bytes))),
            ),
        )(flat_ids, emb_table)

    if n_pad != n_tok:
        out_flat = out_flat[:n_tok]
    return out_flat.reshape(B, S, d_model)


if __name__ == "__main__":
    # Small shapes consistent with the module: batch=2, seq=8, d_model=32, vocab=64.
    d_model = 32
    vocab_size = 64
    B, S = 2, 8

    key = jax.random.PRNGKey(0)
    k_emb, k_ids = jax.random.split(key)

    # nn.Embedding default init: N(0, 1)
    emb_table = jax.random.normal(k_emb, (vocab_size, d_model), dtype=jnp.float32)
    token_ids = jax.random.randint(k_ids, (B, S), 0, vocab_size, dtype=jnp.int32)

    ref = emb_table[token_ids] * math.sqrt(d_model)

    # Exercise all three paths on the small shapes.
    for p in ("onehot", "vmem", "hbm"):
        out = jax.block_until_ready(input_embedding(token_ids, emb_table, path=p))
        assert out.shape == (B, S, d_model), (p, out.shape)
        assert jnp.allclose(out, ref, atol=1e-4, rtol=1e-4), p

    # Auto path (small vocab -> one-hot MXU path).
    out = jax.block_until_ready(input_embedding(token_ids, emb_table))
    assert jnp.allclose(out, ref, atol=1e-4, rtol=1e-4)

    print("KERNEL_OK")
</pallas_src>

<mosaic_0001>
module attributes {stable_mosaic.version = 11 : i64} {
  func.func @kernel(%arg0: i32, %arg1: memref<16x1xi32, #tpu.memory_space<vmem>>, %arg2: memref<64x32xf32, #tpu.memory_space<vmem>>, %arg3: memref<16x32xf32, #tpu.memory_space<vmem>>) attributes {dimension_semantics = [#tpu.dimension_semantics<parallel>], iteration_bounds = array<i64: 1>, scalar_prefetch = 0 : i64, scratch_operands = 0 : i64, tpu.core_type = #tpu.core_type<tc>, window_params = [{transform_indices = @transform_0, window_bounds = array<i64: 16, 1>}, {pipeline_mode = #tpu.pipeline_mode<synchronous>, transform_indices = @transform_1, window_bounds = array<i64: 64, 32>}, {transform_indices = @transform_2, window_bounds = array<i64: 16, 32>}]} {
    %c0 = arith.constant 0 : index
    %c0_0 = arith.constant 0 : index
    %0 = vector.load %arg1[%c0, %c0_0] : memref<16x1xi32, #tpu.memory_space<vmem>>, vector<16x1xi32>
    %1 = tpu.iota {dimensions = array<i32: 1>} : vector<16x64xi32>
    %2 = vector.broadcast %0 : vector<16x1xi32> to vector<16x64xi32>
    %3 = arith.cmpi eq, %1, %2 : vector<16x64xi32>
    %4 = arith.extui %3 : vector<16x64xi1> to vector<16x64xi32>
    %5 = arith.sitofp %4 : vector<16x64xi32> to vector<16x64xf32>
    %c0_1 = arith.constant 0 : index
    %c0_2 = arith.constant 0 : index
    %6 = vector.load %arg2[%c0_1, %c0_2] : memref<64x32xf32, #tpu.memory_space<vmem>>, vector<64x32xf32>
    %cst = arith.constant dense<0.000000e+00> : vector<16x32xf32>
    %7 = tpu.matmul %5, %6, %cst {dimension_numbers = #tpu.dot_dimension_numbers<[1], [0], [0], [1], [0, 0, 1, 1], [], []>, precision = #tpu.contract_precision<fp32>} : vector<16x64xf32>, vector<64x32xf32>, vector<16x32xf32> -> vector<16x32xf32>
    %cst_3 = arith.constant 5.65685415 : f32
    %8 = vector.broadcast %cst_3 : f32 to vector<16x32xf32>
    %9 = arith.mulf %7, %8 : vector<16x32xf32>
    %c0_4 = arith.constant 0 : index
    %c0_5 = arith.constant 0 : index
    %10 = vector.load %arg3[%c0_4, %c0_5] : memref<16x32xf32, #tpu.memory_space<vmem>>, vector<16x32xf32>
    tpu.vector_store %arg3[%c0_4, %c0_5], %9 {strides = array<i32>} : memref<16x32xf32, #tpu.memory_space<vmem>>, vector<16x32xf32>,
    return
  }
  func.func @transform_0(%arg0: i32) -> (i32, i32) {
    %c0_i32 = arith.constant 0 : i32
    %c0_i32_0 = arith.constant 0 : i32
    return %arg0, %c0_i32 : i32, i32
  }
  func.func @transform_1(%arg0: i32) -> (i32, i32) {
    %c0_i32 = arith.constant 0 : i32
    %c0_i32_0 = arith.constant 0 : i32
    %c0_i32_1 = arith.constant 0 : i32
    return %c0_i32, %c0_i32_0 : i32, i32
  }
  func.func @transform_2(%arg0: i32) -> (i32, i32) {
    %c0_i32 = arith.constant 0 : i32
    %c0_i32_0 = arith.constant 0 : i32
    return %arg0, %c0_i32 : i32, i32
  }
}

</mosaic_0001>

<llo_original>
// kernel: tpu_custom_call.1
$region0: #{tpu_custom_call.1}
  #allocation0 [shape = 'u32[]', space=smem, size = 0x4, offset = 0x4, fixed_abs, tag = 'smem constant byte address 0x4 - core index']
  #allocation1 [shape = 'u32[144,128]{1,0:T(1,128)}', space=vmem, size = 0x12000, scoped, tag = 'internal scratch']
  %s0 = inlined_call_operand.vmem [shape: s32[16,1], index: 0, kind: input, shape index: {}]
  %s1 = inlined_call_operand.vmem [shape: f32[64,32], index: 1, kind: input, shape index: {}]
  %s2 = inlined_call_operand.hbm [shape: f32[16,32], index: 2, kind: output, shape index: {}]
  %s3 = sld [smem:[#allocation0]]
  $region18: #{tpu_custom_call.1} parent=0
    _
  %s5 = ssub.s32 1, %s3
  %s6 = scalar_select 0, %s5, %s3
  $region1: #{tpu_custom_call.1} parent=0
    #allocation2 [shape = 'u8[8192]{0}', space=vmem, size = 0x2000, scoped, tag = 'output window, operand 0, single buffered']
    #allocation3 [shape = 's32[1]{0}', space=sflag, size = 0x4, scoped, tag = 'scoped memory for tpu_custom_call.1']
    %7 = vsyncpa [#allocation3], 0
    // Predicated region
    $region2: #{tpu_custom_call.1} parent=1 // pred_check
      _
    $region3: #{tpu_custom_call.1} parent=1 // pred_check_branch
      %9 = sbr.rel (0) target = $region5
    $region4: #{tpu_custom_call.1} parent=1 // pred_region
      _
    $region5: #{tpu_custom_call.1} parent=1 // pred_fallthru
      _
    // Predicated region
    $region6: #{tpu_custom_call.1} parent=1 // pred_check
      _
    $region7: #{tpu_custom_call.1} parent=1 // pred_check_branch
      %11 = sbr.rel (0) target = $region9
    $region8: #{tpu_custom_call.1} parent=1 // pred_region
      _
    $region9: #{tpu_custom_call.1} parent=1 // pred_fallthru
      _
    %v12 = vld [vmem:[%s0] sm:$0xff]
    %v13 = vld [vmem:[%s0 + $0x8] sm:$0xff]
    %v14 = vlaneseq
    %v15 = vand.u32 %v14, 127
    %16 = vset.pattern.permute.xlu0 0
    %17 = vperm.xlu0 %16, %v12
    %v18 = vpop.permute.xlu0 %17
    %19 = vset.pattern.permute.xlu0 0
    %20 = vperm.xlu0 %19, %v13
    %v21 = vpop.permute.xlu0 %20
    %vm22 = vcmp.eq.s32.totalorder %v15, %v18
    %vm23 = vcmp.eq.s32.totalorder %v15, %v21
    %v24 = vsel %vm22, 1, 0
    %v25 = vsel %vm23, 1, 0
    %v26 = vcvt.s32.f32 %v24
    %v27 = vcvt.s32.f32 %v25
    %v28 = vld [vmem:[%s1] sm:$0xff]
    %v29 = vld [vmem:[%s1 + $0x8] sm:$0xff]
    %v30 = vld [vmem:[%s1 + $0x10] sm:$0xff]
    %v31 = vld [vmem:[%s1 + $0x18] sm:$0xff]
    %v32 = vld [vmem:[%s1 + $0x20] sm:$0xff]
    %v33 = vld [vmem:[%s1 + $0x28] sm:$0xff]
    %v34 = vld [vmem:[%s1 + $0x30] sm:$0xff]
    %v35 = vld [vmem:[%s1 + $0x38] sm:$0xff]
    %vm36 = vcmask 523264
    %v38 = vsel %vm36, %v26, 0
    %v41 = vsel %vm36, %v27, 0
    %43 = vmatprep.subr.mxu0 0.0
    %44 = vmatpush1.msra.mxu0 0.0
    %45 = vmatprep.subr.mxu0 0.0
    %46 = vmatpush1.msra.mxu0 0.0
    %47 = vmatprep.subr.mxu0 0.0
    %48 = vmatpush1.msra.mxu0 0.0
    %49 = vmatprep.subr.mxu0 0.0
    %50 = vmatpush1.msra.mxu0 0.0
    %51 = vmatprep.subr.mxu0 0.0
    %52 = vmatpush1.msra.mxu0 0.0
    %53 = vmatprep.subr.mxu0 0.0
    %54 = vmatpush1.msra.mxu0 0.0
    %55 = vmatprep.subr.mxu0 0.0
    %56 = vmatpush1.msra.mxu0 0.0
    %57 = vmatprep.subr.mxu0 0.0
    %58 = vmatpush1.msra.mxu0 0.0
    %59 = vmatprep.subr.mxu0 0.0
    %v60 = vand.u32 %v35, 4294901760
    %61 = vmatpush1.msra.mxu0 %v60
    %62 = vmatprep.subr.mxu0 0.0
    %v63 = vand.u32 %v34, 4294901760
    %64 = vmatpush1.msra.mxu0 %v63
    %65 = vmatprep.subr.mxu0 0.0
    %v66 = vand.u32 %v33, 4294901760
    %67 = vmatpush1.msra.mxu0 %v66
    %68 = vmatprep.subr.mxu0 0.0
    %v69 = vand.u32 %v32, 4294901760
    %70 = vmatpush1.msra.mxu0 %v69
    %71 = vmatprep.subr.mxu0 0.0
    %v72 = vand.u32 %v31, 4294901760
    %73 = vmatpush1.msra.mxu0 %v72
    %74 = vmatprep.subr.mxu0 0.0
    %v75 = vand.u32 %v30, 4294901760
    %76 = vmatpush1.msra.mxu0 %v75
    %77 = vmatprep.subr.mxu0 0.0
    %v78 = vand.u32 %v29, 4294901760
    %79 = vmatpush1.msra.mxu0 %v78
    %80 = vmatprep.subr.mxu0 0.0
    %v81 = vand.u32 %v28, 4294901760
    %82 = vmatpush1.msra.mxu0 %v81
    %83 = vmatprep.subr.mxu0 0.0
    %84 = vmatpush2.msra.mxu0 0.0
    %85 = vmatprep.subr.mxu0 0.0
    %86 = vmatpush2.msra.mxu0 0.0
    %87 = vmatprep.subr.mxu0 0.0
    %88 = vmatpush2.msra.mxu0 0.0
    %89 = vmatprep.subr.mxu0 0.0
    %90 = vmatpush2.msra.mxu0 0.0
    %91 = vmatprep.subr.mxu0 0.0
    %92 = vmatpush2.msra.mxu0 0.0
    %93 = vmatprep.subr.mxu0 0.0
    %94 = vmatpush2.msra.mxu0 0.0
    %95 = vmatprep.subr.mxu0 0.0
    %96 = vmatpush2.msra.mxu0 0.0
    %97 = vmatprep.subr.mxu0 0.0
    %98 = vmatpush2.msra.mxu0 0.0
    %99 = vmatprep.subr.mxu0 0.0
    %100 = vmatpush2.msra.mxu0 0.0
    %101 = vmatprep.subr.mxu0 0.0
    %102 = vmatpush2.msra.mxu0 0.0
    %103 = vmatprep.subr.mxu0 0.0
    %104 = vmatpush2.msra.mxu0 0.0
    %105 = vmatprep.subr.mxu0 0.0
    %106 = vmatpush2.msra.mxu0 0.0
    %107 = vmatprep.subr.mxu0 0.0
    %108 = vmatpush2.msra.mxu0 0.0
    %109 = vmatprep.subr.mxu0 0.0
    %110 = vmatpush2.msra.mxu0 0.0
    %111 = vmatprep.subr.mxu0 0.0
    %112 = vmatpush2.msra.mxu0 0.0
    %113 = vmatprep.subr.mxu0 0.0
    %114 = vmatpush2.msra.mxu0 0.0
    %115 = vmatprep.mubr.f32.mxu0 0.0
    %v116 = vand.u32 %v38, 4294901760
    %v117 = vsub.f32 %v38, %v116
    %v118 = vand.u32 %v117, 4294901760
    %v119 = vsub.f32 %v117, %v118
    %v120 = vand.u32 %v119, 4294901760
    %121 = vmatmul.mubr.f32.gmra.mxu0 %v120
    %v122 = vpop.f32.mrf.mxu0
    %v123 = vadd.f32 0.0, %v122
    %v124 = vpop.f32.mrf.mxu0
    %125 = vmatprep.mubr.f32.mxu0 0.0
    %v126 = vand.u32 %v41, 4294901760
    %v127 = vsub.f32 %v41, %v126
    %v128 = vand.u32 %v127, 4294901760
    %v129 = vsub.f32 %v127, %v128
    %v130 = vand.u32 %v129, 4294901760
    %131 = vmatmul.mubr.f32.gmra.mxu0 %v130
    %v132 = vpop.f32.mrf.mxu0
    %v133 = vadd.f32 0.0, %v132
    %v134 = vpop.f32.mrf.mxu0
    %135 = vdwg.mxu0
    %136 = vmatprep.subr.mxu0 0.0
    %137 = vmatpush1.msra.mxu0 0.0
    %138 = vmatprep.subr.mxu0 0.0
    %139 = vmatpush1.msra.mxu0 0.0
    %140 = vmatprep.subr.mxu0 0.0
    %141 = vmatpush1.msra.mxu0 0.0
    %142 = vmatprep.subr.mxu0 0.0
    %143 = vmatpush1.msra.mxu0 0.0
    %144 = vmatprep.subr.mxu0 0.0
    %145 = vmatpush1.msra.mxu0 0.0
    %146 = vmatprep.subr.mxu0 0.0
    %147 = vmatpush1.msra.mxu0 0.0
    %148 = vmatprep.subr.mxu0 0.0
    %149 = vmatpush1.msra.mxu0 0.0
    %150 = vmatprep.subr.mxu0 0.0
    %151 = vmatpush1.msra.mxu0 0.0
    %152 = vmatprep.subr.mxu0 0.0
    %v153 = vand.u32 %v35, 4294901760
    %v154 = vsub.f32 %v35, %v153
    %v155 = vand.u32 %v154, 4294901760
    %v156 = vsub.f32 %v154, %v155
    %v157 = vand.u32 %v156, 4294901760
    %158 = vmatpush1.msra.mxu0 %v157
    %159 = vmatprep.subr.mxu0 0.0
    %v160 = vand.u32 %v34, 4294901760
    %v161 = vsub.f32 %v34, %v160
    %v162 = vand.u32 %v161, 4294901760
    %v163 = vsub.f32 %v161, %v162
    %v164 = vand.u32 %v163, 4294901760
    %165 = vmatpush1.msra.mxu0 %v164
    %166 = vmatprep.subr.mxu0 0.0
    %v167 = vand.u32 %v33, 4294901760
    %v168 = vsub.f32 %v33, %v167
    %v169 = vand.u32 %v168, 4294901760
    %v170 = vsub.f32 %v168, %v169
    %v171 = vand.u32 %v170, 4294901760
    %172 = vmatpush1.msra.mxu0 %v171
    %173 = vmatprep.subr.mxu0 0.0
    %v174 = vand.u32 %v32, 4294901760
    %v175 = vsub.f32 %v32, %v174
    %v176 = vand.u32 %v175, 4294901760
    %v177 = vsub.f32 %v175, %v176
    %v178 = vand.u32 %v177, 4294901760
    %179 = vmatpush1.msra.mxu0 %v178
    %180 = vmatprep.subr.mxu0 0.0
    %v181 = vand.u32 %v31, 4294901760
    %v182 = vsub.f32 %v31, %v181
    %v183 = vand.u32 %v182, 4294901760
    %v184 = vsub.f32 %v182, %v183
    %v185 = vand.u32 %v184, 4294901760
    %186 = vmatpush1.msra.mxu0 %v185
    %187 = vmatprep.subr.mxu0 0.0
    %v188 = vand.u32 %v30, 4294901760
    %v189 = vsub.f32 %v30, %v188
    %v190 = vand.u32 %v189, 4294901760
    %v191 = vsub.f32 %v189, %v190
    %v192 = vand.u32 %v191, 4294901760
    %193 = vmatpush1.msra.mxu0 %v192
    %194 = vmatprep.subr.mxu0 0.0
    %v195 = vand.u32 %v29, 4294901760
    %v196 = vsub.f32 %v29, %v195
    %v197 = vand.u32 %v196, 4294901760
    %v198 = vsub.f32 %v196, %v197
    %v199 = vand.u32 %v198, 4294901760
    %200 = vmatpush1.msra.mxu0 %v199
    %201 = vmatprep.subr.mxu0 0.0
    %v202 = vand.u32 %v28, 4294901760
    %v203 = vsub.f32 %v28, %v202
    %v204 = vand.u32 %v203, 4294901760
    %v205 = vsub.f32 %v203, %v204
    %v206 = vand.u32 %v205, 4294901760
    %207 = vmatpush1.msra.mxu0 %v206
    %208 = vmatprep.subr.mxu0 0.0
    %209 = vmatpush2.msra.mxu0 0.0
    %210 = vmatprep.subr.mxu0 0.0
    %211 = vmatpush2.msra.mxu0 0.0
    %212 = vmatprep.subr.mxu0 0.0
    %213 = vmatpush2.msra.mxu0 0.0
    %214 = vmatprep.subr.mxu0 0.0
    %215 = vmatpush2.msra.mxu0 0.0
    %216 = vmatprep.subr.mxu0 0.0
    %217 = vmatpush2.msra.mxu0 0.0
    %218 = vmatprep.subr.mxu0 0.0
    %219 = vmatpush2.msra.mxu0 0.0
    %220 = vmatprep.subr.mxu0 0.0
    %221 = vmatpush2.msra.mxu0 0.0
    %222 = vmatprep.subr.mxu0 0.0
    %223 = vmatpush2.msra.mxu0 0.0
    %224 = vmatprep.subr.mxu0 0.0
    %225 = vmatpush2.msra.mxu0 0.0
    %226 = vmatprep.subr.mxu0 0.0
    %227 = vmatpush2.msra.mxu0 0.0
    %228 = vmatprep.subr.mxu0 0.0
    %229 = vmatpush2.msra.mxu0 0.0
    %230 = vmatprep.subr.mxu0 0.0
    %231 = vmatpush2.msra.mxu0 0.0
    %232 = vmatprep.subr.mxu0 0.0
    %233 = vmatpush2.msra.mxu0 0.0
    %234 = vmatprep.subr.mxu0 0.0
    %235 = vmatpush2.msra.mxu0 0.0
    %236 = vmatprep.subr.mxu0 0.0
    %237 = vmatpush2.msra.mxu0 0.0
    %238 = vmatprep.subr.mxu0 0.0
    %239 = vmatpush2.msra.mxu0 0.0
    %240 = vmatprep.mubr.f32.mxu0 0.0
    %v241 = vand.u32 %v38, 4294901760
    %242 = vmatmul.mubr.f32.gmra.mxu0 %v241
    %v243 = vpop.f32.mrf.mxu0
    %v244 = vadd.f32 %v123, %v243
    %v245 = vpop.f32.mrf.mxu0
    %246 = vmatprep.mubr.f32.mxu0 0.0
    %v247 = vand.u32 %v41, 4294901760
    %248 = vmatmul.mubr.f32.gmra.mxu0 %v247
    %v249 = vpop.f32.mrf.mxu0
    %v250 = vadd.f32 %v133, %v249
    %v251 = vpop.f32.mrf.mxu0
    %252 = vdwg.mxu0
    %253 = vmatprep.subr.mxu0 0.0
    %254 = vmatpush1.msra.mxu0 0.0
    %255 = vmatprep.subr.mxu0 0.0
    %256 = vmatpush1.msra.mxu0 0.0
    %257 = vmatprep.subr.mxu0 0.0
    %258 = vmatpush1.msra.mxu0 0.0
    %259 = vmatprep.subr.mxu0 0.0
    %260 = vmatpush1.msra.mxu0 0.0
    %261 = vmatprep.subr.mxu0 0.0
    %262 = vmatpush1.msra.mxu0 0.0
    %263 = vmatprep.subr.mxu0 0.0
    %264 = vmatpush1.msra.mxu0 0.0
    %265 = vmatprep.subr.mxu0 0.0
    %266 = vmatpush1.msra.mxu0 0.0
    %267 = vmatprep.subr.mxu0 0.0
    %268 = vmatpush1.msra.mxu0 0.0
    %269 = vmatprep.subr.mxu0 0.0
    %v270 = vand.u32 %v35, 4294901760
    %v271 = vsub.f32 %v35, %v270
    %272 = vmatpush1.msra.mxu0 %v271
    %273 = vmatprep.subr.mxu0 0.0
    %v274 = vand.u32 %v34, 4294901760
    %v275 = vsub.f32 %v34, %v274
    %276 = vmatpush1.msra.mxu0 %v275
    %277 = vmatprep.subr.mxu0 0.0
    %v278 = vand.u32 %v33, 4294901760
    %v279 = vsub.f32 %v33, %v278
    %280 = vmatpush1.msra.mxu0 %v279
    %281 = vmatprep.subr.mxu0 0.0
    %v282 = vand.u32 %v32, 4294901760
    %v283 = vsub.f32 %v32, %v282
    %284 = vmatpush1.msra.mxu0 %v283
    %285 = vmatprep.subr.mxu0 0.0
    %v286 = vand.u32 %v31, 4294901760
    %v287 = vsub.f32 %v31, %v286
    %288 = vmatpush1.msra.mxu0 %v287
    %289 = vmatprep.subr.mxu0 0.0
    %v290 = vand.u32 %v30, 4294901760
    %v291 = vsub.f32 %v30, %v290
    %292 = vmatpush1.msra.mxu0 %v291
    %293 = vmatprep.subr.mxu0 0.0
    %v294 = vand.u32 %v29, 4294901760
    %v295 = vsub.f32 %v29, %v294
    %296 = vmatpush1.msra.mxu0 %v295
    %297 = vmatprep.subr.mxu0 0.0
    %v298 = vand.u32 %v28, 4294901760
    %v299 = vsub.f32 %v28, %v298
    %300 = vmatpush1.msra.mxu0 %v299
    %301 = vmatprep.subr.mxu0 0.0
    %302 = vmatpush2.msra.mxu0 0.0
    %303 = vmatprep.subr.mxu0 0.0
    %304 = vmatpush2.msra.mxu0 0.0
    %305 = vmatprep.subr.mxu0 0.0
    %306 = vmatpush2.msra.mxu0 0.0
    %307 = vmatprep.subr.mxu0 0.0
    %308 = vmatpush2.msra.mxu0 0.0
    %309 = vmatprep.subr.mxu0 0.0
    %310 = vmatpush2.msra.mxu0 0.0
    %311 = vmatprep.subr.mxu0 0.0
    %312 = vmatpush2.msra.mxu0 0.0
    %313 = vmatprep.subr.mxu0 0.0
    %314 = vmatpush2.msra.mxu0 0.0
    %315 = vmatprep.subr.mxu0 0.0
    %316 = vmatpush2.msra.mxu0 0.0
    %317 = vmatprep.subr.mxu0 0.0
    %318 = vmatpush2.msra.mxu0 0.0
    %319 = vmatprep.subr.mxu0 0.0
    %320 = vmatpush2.msra.mxu0 0.0
    %321 = vmatprep.subr.mxu0 0.0
    %322 = vmatpush2.msra.mxu0 0.0
    %323 = vmatprep.subr.mxu0 0.0
    %324 = vmatpush2.msra.mxu0 0.0
    %325 = vmatprep.subr.mxu0 0.0
    %326 = vmatpush2.msra.mxu0 0.0
    %327 = vmatprep.subr.mxu0 0.0
    %328 = vmatpush2.msra.mxu0 0.0
    %329 = vmatprep.subr.mxu0 0.0
    %330 = vmatpush2.msra.mxu0 0.0
    %331 = vmatprep.subr.mxu0 0.0
    %332 = vmatpush2.msra.mxu0 0.0
    %333 = vmatprep.mubr.f32.mxu0 0.0
    %v334 = vand.u32 %v38, 4294901760
    %v335 = vsub.f32 %v38, %v334
    %336 = vmatmul.mubr.f32.gmra.mxu0 %v335
    %v337 = vpop.f32.mrf.mxu0
    %v338 = vadd.f32 %v244, %v337
    %v339 = vpop.f32.mrf.mxu0
    %340 = vmatprep.mubr.f32.mxu0 0.0
    %v341 = vand.u32 %v41, 4294901760
    %v342 = vsub.f32 %v41, %v341
    %343 = vmatmul.mubr.f32.gmra.mxu0 %v342
    %v344 = vpop.f32.mrf.mxu0
    %v345 = vadd.f32 %v250, %v344
    %v346 = vpop.f32.mrf.mxu0
    %347 = vdwg.mxu0
    %348 = vmatprep.subr.mxu0 0.0
    %349 = vmatpush1.msra.mxu0 0.0
    %350 = vmatprep.subr.mxu0 0.0
    %351 = vmatpush1.msra.mxu0 0.0
    %352 = vmatprep.subr.mxu0 0.0
    %353 = vmatpush1.msra.mxu0 0.0
    %354 = vmatprep.subr.mxu0 0.0
    %355 = vmatpush1.msra.mxu0 0.0
    %356 = vmatprep.subr.mxu0 0.0
    %357 = vmatpush1.msra.mxu0 0.0
    %358 = vmatprep.subr.mxu0 0.0
    %359 = vmatpush1.msra.mxu0 0.0
    %360 = vmatprep.subr.mxu0 0.0
    %361 = vmatpush1.msra.mxu0 0.0
    %362 = vmatprep.subr.mxu0 0.0
    %363 = vmatpush1.msra.mxu0 0.0
    %364 = vmatprep.subr.mxu0 0.0
    %v365 = vand.u32 %v35, 4294901760
    %366 = vmatpush1.msra.mxu0 %v365
    %367 = vmatprep.subr.mxu0 0.0
    %v368 = vand.u32 %v34, 4294901760
    %369 = vmatpush1.msra.mxu0 %v368
    %370 = vmatprep.subr.mxu0 0.0
    %v371 = vand.u32 %v33, 4294901760
    %372 = vmatpush1.msra.mxu0 %v371
    %373 = vmatprep.subr.mxu0 0.0
    %v374 = vand.u32 %v32, 4294901760
    %375 = vmatpush1.msra.mxu0 %v374
    %376 = vmatprep.subr.mxu0 0.0
    %v377 = vand.u32 %v31, 4294901760
    %378 = vmatpush1.msra.mxu0 %v377
    %379 = vmatprep.subr.mxu0 0.0
    %v380 = vand.u32 %v30, 4294901760
    %381 = vmatpush1.msra.mxu0 %v380
    %382 = vmatprep.subr.mxu0 0.0
    %v383 = vand.u32 %v29, 4294901760
    %384 = vmatpush1.msra.mxu0 %v383
    %385 = vmatprep.subr.mxu0 0.0
    %v386 = vand.u32 %v28, 4294901760
    %387 = vmatpush1.msra.mxu0 %v386
    %388 = vmatprep.subr.mxu0 0.0
    %389 = vmatpush2.msra.mxu0 0.0
    %390 = vmatprep.subr.mxu0 0.0
    %391 = vmatpush2.msra.mxu0 0.0
    %392 = vmatprep.subr.mxu0 0.0
    %393 = vmatpush2.msra.mxu0 0.0
    %394 = vmatprep.subr.mxu0 0.0
    %395 = vmatpush2.msra.mxu0 0.0
    %396 = vmatprep.subr.mxu0 0.0
    %397 = vmatpush2.msra.mxu0 0.0
    %398 = vmatprep.subr.mxu0 0.0
    %399 = vmatpush2.msra.mxu0 0.0
    %400 = vmatprep.subr.mxu0 0.0
    %401 = vmatpush2.msra.mxu0 0.0
    %402 = vmatprep.subr.mxu0 0.0
    %403 = vmatpush2.msra.mxu0 0.0
    %404 = vmatprep.subr.mxu0 0.0
    %405 = vmatpush2.msra.mxu0 0.0
    %406 = vmatprep.subr.mxu0 0.0
    %407 = vmatpush2.msra.mxu0 0.0
    %408 = vmatprep.subr.mxu0 0.0
    %409 = vmatpush2.msra.mxu0 0.0
    %410 = vmatprep.subr.mxu0 0.0
    %411 = vmatpush2.msra.mxu0 0.0
    %412 = vmatprep.subr.mxu0 0.0
    %413 = vmatpush2.msra.mxu0 0.0
    %414 = vmatprep.subr.mxu0 0.0
    %415 = vmatpush2.msra.mxu0 0.0
    %416 = vmatprep.subr.mxu0 0.0
    %417 = vmatpush2.msra.mxu0 0.0
    %418 = vmatprep.subr.mxu0 0.0
    %419 = vmatpush2.msra.mxu0 0.0
    %420 = vmatprep.mubr.f32.mxu0 0.0
    %v421 = vand.u32 %v38, 4294901760
    %v422 = vsub.f32 %v38, %v421
    %v423 = vand.u32 %v422, 4294901760
    %424 = vmatmul.mubr.f32.gmra.mxu0 %v423
    %v425 = vpop.f32.mrf.mxu0
    %v426 = vadd.f32 %v338, %v425
    %v427 = vpop.f32.mrf.mxu0
    %428 = vmatprep.mubr.f32.mxu0 0.0
    %v429 = vand.u32 %v41, 4294901760
    %v430 = vsub.f32 %v41, %v429
    %v431 = vand.u32 %v430, 4294901760
    %432 = vmatmul.mubr.f32.gmra.mxu0 %v431
    %v433 = vpop.f32.mrf.mxu0
    %v434 = vadd.f32 %v345, %v433
    %v435 = vpop.f32.mrf.mxu0
    %436 = vdwg.mxu0
    %437 = vmatprep.subr.mxu0 0.0
    %438 = vmatpush1.msra.mxu0 0.0
    %439 = vmatprep.subr.mxu0 0.0
    %440 = vmatpush1.msra.mxu0 0.0
    %441 = vmatprep.subr.mxu0 0.0
    %442 = vmatpush1.msra.mxu0 0.0
    %443 = vmatprep.subr.mxu0 0.0
    %444 = vmatpush1.msra.mxu0 0.0
    %445 = vmatprep.subr.mxu0 0.0
    %446 = vmatpush1.msra.mxu0 0.0
    %447 = vmatprep.subr.mxu0 0.0
    %448 = vmatpush1.msra.mxu0 0.0
    %449 = vmatprep.subr.mxu0 0.0
    %450 = vmatpush1.msra.mxu0 0.0
    %451 = vmatprep.subr.mxu0 0.0
    %452 = vmatpush1.msra.mxu0 0.0
    %453 = vmatprep.subr.mxu0 0.0
    %v454 = vand.u32 %v35, 4294901760
    %v455 = vsub.f32 %v35, %v454
    %v456 = vand.u32 %v455, 4294901760
    %457 = vmatpush1.msra.mxu0 %v456
    %458 = vmatprep.subr.mxu0 0.0
    %v459 = vand.u32 %v34, 4294901760
    %v460 = vsub.f32 %v34, %v459
    %v461 = vand.u32 %v460, 4294901760
    %462 = vmatpush1.msra.mxu0 %v461
    %463 = vmatprep.subr.mxu0 0.0
    %v464 = vand.u32 %v33, 4294901760
    %v465 = vsub.f32 %v33, %v464
    %v466 = vand.u32 %v465, 4294901760
    %467 = vmatpush1.msra.mxu0 %v466
    %468 = vmatprep.subr.mxu0 0.0
    %v469 = vand.u32 %v32, 4294901760
    %v470 = vsub.f32 %v32, %v469
    %v471 = vand.u32 %v470, 4294901760
    %472 = vmatpush1.msra.mxu0 %v471
    %473 = vmatprep.subr.mxu0 0.0
    %v474 = vand.u32 %v31, 4294901760
    %v475 = vsub.f32 %v31, %v474
    %v476 = vand.u32 %v475, 4294901760
    %477 = vmatpush1.msra.mxu0 %v476
    %478 = vmatprep.subr.mxu0 0.0
    %v479 = vand.u32 %v30, 4294901760
    %v480 = vsub.f32 %v30, %v479
    %v481 = vand.u32 %v480, 4294901760
    %482 = vmatpush1.msra.mxu0 %v481
    %483 = vmatprep.subr.mxu0 0.0
    %v484 = vand.u32 %v29, 4294901760
    %v485 = vsub.f32 %v29, %v484
    %v486 = vand.u32 %v485, 4294901760
    %487 = vmatpush1.msra.mxu0 %v486
    %488 = vmatprep.subr.mxu0 0.0
    %v489 = vand.u32 %v28, 4294901760
    %v490 = vsub.f32 %v28, %v489
    %v491 = vand.u32 %v490, 4294901760
    %492 = vmatpush1.msra.mxu0 %v491
    %493 = vmatprep.subr.mxu0 0.0
    %494 = vmatpush2.msra.mxu0 0.0
    %495 = vmatprep.subr.mxu0 0.0
    %496 = vmatpush2.msra.mxu0 0.0
    %497 = vmatprep.subr.mxu0 0.0
    %498 = vmatpush2.msra.mxu0 0.0
    %499 = vmatprep.subr.mxu0 0.0
    %500 = vmatpush2.msra.mxu0 0.0
    %501 = vmatprep.subr.mxu0 0.0
    %502 = vmatpush2.msra.mxu0 0.0
    %503 = vmatprep.subr.mxu0 0.0
    %504 = vmatpush2.msra.mxu0 0.0
    %505 = vmatprep.subr.mxu0 0.0
    %506 = vmatpush2.msra.mxu0 0.0
    %507 = vmatprep.subr.mxu0 0.0
    %508 = vmatpush2.msra.mxu0 0.0
    %509 = vmatprep.subr.mxu0 0.0
    %510 = vmatpush2.msra.mxu0 0.0
    %511 = vmatprep.subr.mxu0 0.0
    %512 = vmatpush2.msra.mxu0 0.0
    %513 = vmatprep.subr.mxu0 0.0
    %514 = vmatpush2.msra.mxu0 0.0
    %515 = vmatprep.subr.mxu0 0.0
    %516 = vmatpush2.msra.mxu0 0.0
    %517 = vmatprep.subr.mxu0 0.0
    %518 = vmatpush2.msra.mxu0 0.0
    %519 = vmatprep.subr.mxu0 0.0
    %520 = vmatpush2.msra.mxu0 0.0
    %521 = vmatprep.subr.mxu0 0.0
    %522 = vmatpush2.msra.mxu0 0.0
    %523 = vmatprep.subr.mxu0 0.0
    %524 = vmatpush2.msra.mxu0 0.0
    %525 = vmatprep.mubr.f32.mxu0 0.0
    %v526 = vand.u32 %v38, 4294901760
    %527 = vmatmul.mubr.f32.gmra.mxu0 %v526
    %v528 = vpop.f32.mrf.mxu0
    %v529 = vadd.f32 %v426, %v528
    %v530 = vpop.f32.mrf.mxu0
    %531 = vmatprep.mubr.f32.mxu0 0.0
    %v532 = vand.u32 %v41, 4294901760
    %533 = vmatmul.mubr.f32.gmra.mxu0 %v532
    %v534 = vpop.f32.mrf.mxu0
    %v535 = vadd.f32 %v434, %v534
    %v536 = vpop.f32.mrf.mxu0
    %537 = vdwg.mxu0
    %538 = vmatprep.subr.mxu0 0.0
    %539 = vmatpush1.msra.mxu0 0.0
    %540 = vmatprep.subr.mxu0 0.0
    %541 = vmatpush1.msra.mxu0 0.0
    %542 = vmatprep.subr.mxu0 0.0
    %543 = vmatpush1.msra.mxu0 0.0
    %544 = vmatprep.subr.mxu0 0.0
    %545 = vmatpush1.msra.mxu0 0.0
    %546 = vmatprep.subr.mxu0 0.0
    %547 = vmatpush1.msra.mxu0 0.0
    %548 = vmatprep.subr.mxu0 0.0
    %549 = vmatpush1.msra.mxu0 0.0
    %550 = vmatprep.subr.mxu0 0.0
    %551 = vmatpush1.msra.mxu0 0.0
    %552 = vmatprep.subr.mxu0 0.0
    %553 = vmatpush1.msra.mxu0 0.0
    %554 = vmatprep.subr.mxu0 0.0
    %v555 = vand.u32 %v35, 4294901760
    %556 = vmatpush1.msra.mxu0 %v555
    %557 = vmatprep.subr.mxu0 0.0
    %v558 = vand.u32 %v34, 4294901760
    %559 = vmatpush1.msra.mxu0 %v558
    %560 = vmatprep.subr.mxu0 0.0
    %v561 = vand.u32 %v33, 4294901760
    %562 = vmatpush1.msra.mxu0 %v561
    %563 = vmatprep.subr.mxu0 0.0
    %v564 = vand.u32 %v32, 4294901760
    %565 = vmatpush1.msra.mxu0 %v564
    %566 = vmatprep.subr.mxu0 0.0
    %v567 = vand.u32 %v31, 4294901760
    %568 = vmatpush1.msra.mxu0 %v567
    %569 = vmatprep.subr.mxu0 0.0
    %v570 = vand.u32 %v30, 4294901760
    %571 = vmatpush1.msra.mxu0 %v570
    %572 = vmatprep.subr.mxu0 0.0
    %v573 = vand.u32 %v29, 4294901760
    %574 = vmatpush1.msra.mxu0 %v573
    %575 = vmatprep.subr.mxu0 0.0
    %v576 = vand.u32 %v28, 4294901760
    %577 = vmatpush1.msra.mxu0 %v576
    %578 = vmatprep.subr.mxu0 0.0
    %579 = vmatpush2.msra.mxu0 0.0
    %580 = vmatprep.subr.mxu0 0.0
    %581 = vmatpush2.msra.mxu0 0.0
    %582 = vmatprep.subr.mxu0 0.0
    %583 = vmatpush2.msra.mxu0 0.0
    %584 = vmatprep.subr.mxu0 0.0
    %585 = vmatpush2.msra.mxu0 0.0
    %586 = vmatprep.subr.mxu0 0.0
    %587 = vmatpush2.msra.mxu0 0.0
    %588 = vmatprep.subr.mxu0 0.0
    %589 = vmatpush2.msra.mxu0 0.0
    %590 = vmatprep.subr.mxu0 0.0
    %591 = vmatpush2.msra.mxu0 0.0
    %592 = vmatprep.subr.mxu0 0.0
    %593 = vmatpush2.msra.mxu0 0.0
    %594 = vmatprep.subr.mxu0 0.0
    %595 = vmatpush2.msra.mxu0 0.0
    %596 = vmatprep.subr.mxu0 0.0
    %597 = vmatpush2.msra.mxu0 0.0
    %598 = vmatprep.subr.mxu0 0.0
    %599 = vmatpush2.msra.mxu0 0.0
    %600 = vmatprep.subr.mxu0 0.0
    %601 = vmatpush2.msra.mxu0 0.0
    %602 = vmatprep.subr.mxu0 0.0
    %603 = vmatpush2.msra.mxu0 0.0
    %604 = vmatprep.subr.mxu0 0.0
    %605 = vmatpush2.msra.mxu0 0.0
    %606 = vmatprep.subr.mxu0 0.0
    %607 = vmatpush2.msra.mxu0 0.0
    %608 = vmatprep.subr.mxu0 0.0
    %609 = vmatpush2.msra.mxu0 0.0
    %610 = vmatprep.mubr.f32.mxu0 0.0
    %v611 = vand.u32 %v38, 4294901760
    %612 = vmatmul.mubr.f32.gmra.mxu0 %v611
    %v613 = vpop.f32.mrf.mxu0
    %v614 = vadd.f32 %v529, %v613
    %v615 = vpop.f32.mrf.mxu0
    %616 = vmatprep.mubr.f32.mxu0 0.0
    %v617 = vand.u32 %v41, 4294901760
    %618 = vmatmul.mubr.f32.gmra.mxu0 %v617
    %v619 = vpop.f32.mrf.mxu0
    %v620 = vadd.f32 %v535, %v619
    %v621 = vpop.f32.mrf.mxu0
    %622 = vdwg.mxu0
    %v623 = vmul.f32 %v614, 5.656854
    %v624 = vmul.f32 %v620, 5.656854
    %vm625 = vcmask 261120
    %626 = vst.msk [vmem:[#allocation2] sm:$0xff] %vm625, %v623
    %627 = vst.msk [vmem:[#allocation2 + $0x8] sm:$0xff] %vm625, %v624
    // Predicated region
    $region10: #{tpu_custom_call.1} parent=1 // pred_check
      _
    $region11: #{tpu_custom_call.1} parent=1 // pred_check_branch
      %629 = sbr.rel (0) target = $region13
    $region12: #{tpu_custom_call.1} parent=1 // pred_region
      %s631 = ssub.s32 256, 256
      %632 = vsyncadd [#allocation3], %s631
      %s633 = sshll.u32 [#allocation2], 4
      %s634 = int_to_ptr.vmem [resolvable:$true] %s633
      %639 = dma.vmem_to_hbm [thread:$0]  %s634, 256, %s2, [#allocation3], 128, 128, 8
    $region13: #{tpu_custom_call.1} parent=1 // pred_fallthru
      _
    // Predicated region
    $region14: #{tpu_custom_call.1} parent=1 // pred_check
      _
    $region15: #{tpu_custom_call.1} parent=1 // pred_check_branch
      %641 = sbr.rel (0) target = $region17
    $region16: #{tpu_custom_call.1} parent=1 // pred_region
      %642 = dma.done [#allocation3], 256
    $region17: #{tpu_custom_call.1} parent=1 // pred_fallthru
      _
    %643 = vsyncpa [#allocation3], 1

</llo_original>
